<compile_context>
chip_gen: v7x
topology: tpu7x:2x2x1
jax: 0.10.0
libtpu: 0.0.40
codegen_flags: <defaults>
</compile_context>

<pallas_src>
import functools

import jax
import jax.numpy as jnp
from jax import lax
from jax.experimental import pallas as pl
from jax.experimental.pallas import tpu as pltpu


def _round_up(v, m):
    return (v + m - 1) // m * m


@functools.lru_cache(maxsize=None)
def _vmem_limit_bytes():
    # ~75% of physical VMEM (96 MiB on v5e/v6e, 48 MiB on v7x). Conservative
    # 48 MiB fallback if the query is unavailable.
    try:
        cap = int(pltpu.get_tpu_info().vmem_capacity_bytes)
        return max(32 * 1024 * 1024, (cap * 3) // 4)
    except Exception:  # noqa: BLE001 - any failure -> safe default
        return 48 * 1024 * 1024


def _pick_tile_n(n, d):
    """Row tile for the memory-bound row-tiled kernels (f32)."""
    vmem = _vmem_limit_bytes()
    # One (tile_n, d) block ~<= min(12 MiB, vmem/6); double-buffered in + out
    # blocks then stay well under the budget.
    target_bytes = min(12 << 20, vmem // 6)
    rows = max(8, (target_bytes // (d * 4)) // 8 * 8)
    rows = min(rows, 8192)
    if rows >= n:
        return n                      # single block == full array (always legal)
    return rows                       # multiple of 8 -> legal sublane tiling


# ----------------------------------------------------------------------------
# layernorm (nn.LayerNorm(hidden_dim), eps=1e-5), row-tiled
# ----------------------------------------------------------------------------
def _layernorm_kernel(x_ref, w_ref, b_ref, o_ref, *, inv_d, eps):
    x = x_ref[...]
    mu = jnp.sum(x, axis=-1, keepdims=True) * inv_d
    cen = x - mu
    var = jnp.sum(cen * cen, axis=-1, keepdims=True) * inv_d
    o_ref[...] = cen * lax.rsqrt(var + eps) * w_ref[...] + b_ref[...]


def layernorm_forward(x, weight, bias, eps=1e-5):
    x = jnp.asarray(x, jnp.float32)
    n, d = x.shape
    w = weight.reshape(1, d).astype(jnp.float32)
    b = bias.reshape(1, d).astype(jnp.float32)
    tile_n = _pick_tile_n(n, d)

    return pl.pallas_call(
        functools.partial(_layernorm_kernel, inv_d=1.0 / float(d), eps=eps),
        out_shape=jax.ShapeDtypeStruct((n, d), jnp.float32),
        grid=(pl.cdiv(n, tile_n),),
        in_specs=[pl.BlockSpec((tile_n, d), lambda i: (i, 0)),
                  pl.BlockSpec((1, d), lambda i: (0, 0)),
                  pl.BlockSpec((1, d), lambda i: (0, 0))],
        out_specs=pl.BlockSpec((tile_n, d), lambda i: (i, 0)),
        compiler_params=pltpu.CompilerParams(
            dimension_semantics=("parallel",),
            vmem_limit_bytes=_vmem_limit_bytes()),
    )(x, w, b)


# ----------------------------------------------------------------------------
# batchnorm (nn.BatchNorm1d(hidden_dim), training-mode batch stats, eps=1e-5)
# ----------------------------------------------------------------------------
def _bn_fused_kernel(x_ref, w_ref, b_ref, o_ref, *, inv_n, eps):
    # x fully resident: exact centered variance (no E[x^2]-mu^2 cancellation),
    # single HBM read of x.
    x = x_ref[...]
    mu = jnp.sum(x, axis=0, keepdims=True) * inv_n
    cen = x - mu
    var = jnp.sum(cen * cen, axis=0, keepdims=True) * inv_n
    o_ref[...] = cen * (w_ref[...] * lax.rsqrt(var + eps)) + b_ref[...]


def _bn_stats_kernel(x_ref, w_ref, b_ref, scale_ref, shift_ref,
                     sum_sc, sumsq_sc, *, tile_n, n_true, eps, need_row_mask):
    i = pl.program_id(0)

    @pl.when(i == 0)
    def _():
        sum_sc[...] = jnp.zeros_like(sum_sc)
        sumsq_sc[...] = jnp.zeros_like(sumsq_sc)

    x = x_ref[...]
    if need_row_mask:
        rows = lax.broadcasted_iota(jnp.int32, (tile_n, 1), 0) + i * tile_n
        x = jnp.where(rows < n_true, x, 0.0)
    sum_sc[...] += jnp.sum(x, axis=0, keepdims=True)
    sumsq_sc[...] += jnp.sum(x * x, axis=0, keepdims=True)

    @pl.when(i == pl.num_programs(0) - 1)
    def _():
        inv_n = 1.0 / float(n_true)
        mu = sum_sc[...] * inv_n
        # TODO(synk): E[x^2]-mu^2 cancels when |mean| >> std; clamped to >= 0.
        var = jnp.maximum(sumsq_sc[...] * inv_n - mu * mu, 0.0)
        scale = w_ref[...] * lax.rsqrt(var + eps)
        scale_ref[...] = scale
        shift_ref[...] = b_ref[...] - mu * scale


def _bn_apply_kernel(x_ref, scale_ref, shift_ref, o_ref):
    o_ref[...] = x_ref[...] * scale_ref[...] + shift_ref[...]


def batchnorm_forward(x, weight, bias, eps=1e-5):
    # TODO(synk): running_mean/running_var momentum updates are not modeled;
    # forward matches BatchNorm1d training-mode (batch statistics).
    x = jnp.asarray(x, jnp.float32)
    n, d = x.shape
    w = weight.reshape(1, d).astype(jnp.float32)
    b = bias.reshape(1, d).astype(jnp.float32)
    vmem = _vmem_limit_bytes()

    # Fused single-pass path when x comfortably fits in VMEM.
    if 3 * n * d * 4 <= vmem // 2:
        return pl.pallas_call(
            functools.partial(_bn_fused_kernel, inv_n=1.0 / float(n), eps=eps),
            out_shape=jax.ShapeDtypeStruct((n, d), jnp.float32),
            grid=(1,),
            in_specs=[pl.BlockSpec((n, d), lambda i: (0, 0)),
                      pl.BlockSpec((1, d), lambda i: (0, 0)),
                      pl.BlockSpec((1, d), lambda i: (0, 0))],
            out_specs=pl.BlockSpec((n, d), lambda i: (0, 0)),
            compiler_params=pltpu.CompilerParams(
                dimension_semantics=("arbitrary",),
                vmem_limit_bytes=vmem),
        )(x, w, b)

    # Two-pass path: tiled reduction (scale/shift finalize) + tiled apply.
    tile_n = _pick_tile_n(n, d)
    grid = (pl.cdiv(n, tile_n),)
    row_spec = pl.BlockSpec((tile_n, d), lambda i: (i, 0))
    vec_spec = pl.BlockSpec((1, d), lambda i: (0, 0))

    # TODO(synk): on v7x the stats pass could be split across both TensorCores
    # via per-core partial-sum outputs; kept single-core ("arbitrary") here.
    scale, shift = pl.pallas_call(
        functools.partial(_bn_stats_kernel, tile_n=tile_n, n_true=n, eps=eps,
                          need_row_mask=(n % tile_n != 0)),
        out_shape=(jax.ShapeDtypeStruct((1, d), jnp.float32),
                   jax.ShapeDtypeStruct((1, d), jnp.float32)),
        grid=grid,
        in_specs=[row_spec, vec_spec, vec_spec],
        out_specs=(vec_spec, vec_spec),
        scratch_shapes=[pltpu.VMEM((1, d), jnp.float32),
                        pltpu.VMEM((1, d), jnp.float32)],
        compiler_params=pltpu.CompilerParams(
            dimension_semantics=("arbitrary",),
            vmem_limit_bytes=vmem),
    )(x, w, b)

    return pl.pallas_call(
        _bn_apply_kernel,
        out_shape=jax.ShapeDtypeStruct((n, d), jnp.float32),
        grid=grid,
        in_specs=[row_spec, vec_spec, vec_spec],
        out_specs=row_spec,
        compiler_params=pltpu.CompilerParams(
            dimension_semantics=("parallel",),
            vmem_limit_bytes=vmem),
    )(x, scale, shift)


# ----------------------------------------------------------------------------
# graphnorm (feature-axis tiled, full-N resident, in-kernel membership masks)
# ----------------------------------------------------------------------------
def _graphnorm_kernel(segr_ref, segc_ref, invc_ref, x_ref, w_ref, b_ref,
                      ms_ref, o_ref):
    # segr: (1, N) int32 node->graph id   segc: (N, 1) int32 (same values)
    # invc: (B, 1) f32 = 1 / batch_num_nodes
    # x:    (N, TILE_D) f32               w/b/ms: (1, TILE_D) f32
    nb = invc_ref.shape[0]
    nn = segr_ref.shape[1]
    segr = segr_ref[...]
    segc = segc_ref[...]
    x = x_ref[...]

    # Membership mask and its transpose built in-kernel (no HBM mask traffic,
    # no XLU transpose); cost is O(B*N) VPU per feature tile.
    m = (lax.broadcasted_iota(jnp.int32, (nb, nn), 0) == segr
         ).astype(jnp.float32)                                      # (B, N)
    mt = (lax.broadcasted_iota(jnp.int32, (nn, nb), 1) == segc
          ).astype(jnp.float32)                                     # (N, B)

    inv_cnt = invc_ref[...]                                         # (B, 1)

    # per-graph mean == scatter_add(x) / batch_list
    sums = jnp.dot(m, x, preferred_element_type=jnp.float32)        # (B, TD)
    mean = sums * inv_cnt
    # repeat_interleave(mean, batch_list) == m^T @ mean
    mean_n = jnp.dot(mt, mean, preferred_element_type=jnp.float32)  # (N, TD)

    sub = x - mean_n * ms_ref[...]

    # per-graph biased variance of sub, rsqrt on the small (B, TD) tensor
    var = jnp.dot(m, sub * sub, preferred_element_type=jnp.float32) * inv_cnt
    inv_std = lax.rsqrt(var + 1e-6)                                 # (B, TD)
    inv_std_n = jnp.dot(mt, inv_std, preferred_element_type=jnp.float32)

    o_ref[...] = w_ref[...] * sub * inv_std_n + b_ref[...]


def _pick_graphnorm_tile_d(n, d, vmem):
    if d % 128 != 0:
        return d                       # single full-width block (legal: == D)
    budget = int(vmem * 0.45)          # ~2x in + 2x out + intermediates per tile
    best = 128
    for t in (1024, 512, 256, 128):
        if d % t == 0 and 7 * n * t * 4 <= budget:
            best = t
            break
    # Prefer >= 2 feature tiles so the "parallel" axis can use both v7x cores.
    if best > 128 and d // best < 2:
        best //= 2
    return min(best, d)


def graphnorm_forward(x, batch_num_nodes, weight, bias, mean_scale):
    x = jnp.asarray(x, jnp.float32)
    n, d = x.shape
    counts = jnp.asarray(batch_num_nodes, dtype=jnp.int32)
    nb = int(counts.shape[0])
    if isinstance(batch_num_nodes, (list, tuple)):
        assert sum(int(c) for c in batch_num_nodes) == n, \
            "sum(batch_num_nodes) must equal x.shape[0]"

    vmem = _vmem_limit_bytes()
    tile_d = _pick_graphnorm_tile_d(n, d, vmem)

    seg = jnp.repeat(jnp.arange(nb, dtype=jnp.int32), counts,
                     total_repeat_length=n)                          # (N,)
    seg_row = seg.reshape(1, n)
    seg_col = seg.reshape(n, 1)
    # NOTE: a zero entry in batch_num_nodes yields inf/nan for that graph's
    # rows, matching the PyTorch reference behaviour.
    inv_cnt = (1.0 / counts.astype(jnp.float32)).reshape(nb, 1)

    w = weight.reshape(1, d).astype(jnp.float32)
    b = bias.reshape(1, d).astype(jnp.float32)
    ms = mean_scale.reshape(1, d).astype(jnp.float32)

    # TODO(synk): for N too large for full-N residency (esp. v7x's 64 MiB
    # VMEM) a node-tiled two-pass E[x]/E[x^2] restructure would be needed;
    # full-N is kept here for exact numerics.
    return pl.pallas_call(
        _graphnorm_kernel,
        out_shape=jax.ShapeDtypeStruct((n, d), jnp.float32),
        grid=(d // tile_d,),
        in_specs=[
            pl.BlockSpec((1, n), lambda j: (0, 0)),
            pl.BlockSpec((n, 1), lambda j: (0, 0)),
            pl.BlockSpec((nb, 1), lambda j: (0, 0)),
            pl.BlockSpec((n, tile_d), lambda j: (0, j)),
            pl.BlockSpec((1, tile_d), lambda j: (0, j)),
            pl.BlockSpec((1, tile_d), lambda j: (0, j)),
            pl.BlockSpec((1, tile_d), lambda j: (0, j)),
        ],
        out_specs=pl.BlockSpec((n, tile_d), lambda j: (0, j)),
        compiler_params=pltpu.CompilerParams(
            dimension_semantics=("parallel",),
            vmem_limit_bytes=vmem),
    )(seg_row, seg_col, inv_cnt, x, w, b, ms)


# ----------------------------------------------------------------------------
# NormLayer wrapper (deterministic PyTorch-style init: ones / zeros)
# ----------------------------------------------------------------------------
class Graph:
    def __init__(self, batch_num_nodes):
        self.batch_num_nodes = batch_num_nodes


class NormLayer:
    def __init__(self, hidden_dim, norm_type):
        self.norm_type = norm_type
        self.weight = jnp.ones((hidden_dim,), jnp.float32)
        self.bias = jnp.zeros((hidden_dim,), jnp.float32)
        if norm_type == "graphnorm":
            self.mean_scale = jnp.ones((hidden_dim,), jnp.float32)
        elif norm_type not in ("batchnorm", "layernorm"):
            raise NotImplementedError

    def __call__(self, graph, x):
        if self.norm_type == "batchnorm":
            return batchnorm_forward(x, self.weight, self.bias)
        if self.norm_type == "layernorm":
            return layernorm_forward(x, self.weight, self.bias)
        return graphnorm_forward(x, graph.batch_num_nodes,
                                 self.weight, self.bias, self.mean_scale)


# ----------------------------------------------------------------------------
# pure-JAX references
# ----------------------------------------------------------------------------
def _graphnorm_ref(x, counts, weight, bias, mean_scale):
    b = len(counts)
    counts = jnp.asarray(counts, jnp.int32)
    seg = jnp.repeat(jnp.arange(b), counts, total_repeat_length=x.shape[0])
    sums = jax.ops.segment_sum(x, seg, num_segments=b)
    mean = sums / counts[:, None].astype(jnp.float32)
    sub = x - mean[seg] * mean_scale
    ssq = jax.ops.segment_sum(sub * sub, seg, num_segments=b)
    std = jnp.sqrt(ssq / counts[:, None].astype(jnp.float32) + 1e-6)
    return weight * sub / std[seg] + bias


def _layernorm_ref(x, w, b):
    mu = jnp.mean(x, axis=-1, keepdims=True)
    var = jnp.mean((x - mu) ** 2, axis=-1, keepdims=True)
    return (x - mu) / jnp.sqrt(var + 1e-5) * w + b


def _batchnorm_ref(x, w, b):
    mu = jnp.mean(x, axis=0, keepdims=True)
    var = jnp.mean((x - mu) ** 2, axis=0, keepdims=True)
    return (x - mu) / jnp.sqrt(var + 1e-5) * w + b


if __name__ == "__main__":
    key = jax.random.PRNGKey(0)
    hidden = 32
    batch_num_nodes = [5, 4, 7]          # 3 graphs, 16 nodes total
    n_nodes = sum(batch_num_nodes)
    x = jax.random.normal(key, (n_nodes, hidden), dtype=jnp.float32)

    graph = Graph(batch_num_nodes)

    # graphnorm (the bespoke path of the module)
    gn = NormLayer(hidden, "graphnorm")
    out_gn = jax.block_until_ready(gn(graph, x))
    ref_gn = _graphnorm_ref(x, batch_num_nodes, gn.weight, gn.bias,
                            gn.mean_scale)
    assert out_gn.shape == x.shape
    assert jnp.max(jnp.abs(out_gn - ref_gn)) < 1e-4

    # layernorm
    ln = NormLayer(hidden, "layernorm")
    out_ln = jax.block_until_ready(ln(graph, x))
    assert out_ln.shape == x.shape
    assert jnp.max(jnp.abs(out_ln - _layernorm_ref(x, ln.weight, ln.bias))) < 1e-4

    # batchnorm
    bn = NormLayer(hidden, "batchnorm")
    out_bn = jax.block_until_ready(bn(graph, x))
    assert out_bn.shape == x.shape
    assert jnp.max(jnp.abs(out_bn - _batchnorm_ref(x, bn.weight, bn.bias))) < 1e-4

    print("KERNEL_OK")
</pallas_src>

<mosaic_0001>
module attributes {stable_mosaic.version = 11 : i64} {
  func.func @_graphnorm_kernel(%arg0: i32, %arg1: memref<1x16xi32, #tpu.memory_space<vmem>>, %arg2: memref<16x1xi32, #tpu.memory_space<vmem>>, %arg3: memref<3x1xf32, #tpu.memory_space<vmem>>, %arg4: memref<16x32xf32, #tpu.memory_space<vmem>>, %arg5: memref<1x32xf32, #tpu.memory_space<vmem>>, %arg6: memref<1x32xf32, #tpu.memory_space<vmem>>, %arg7: memref<1x32xf32, #tpu.memory_space<vmem>>, %arg8: memref<16x32xf32, #tpu.memory_space<vmem>>) attributes {dimension_semantics = [#tpu.dimension_semantics<parallel>], iteration_bounds = array<i64: 1>, scalar_prefetch = 0 : i64, scratch_operands = 0 : i64, tpu.core_type = #tpu.core_type<tc>, window_params = [{pipeline_mode = #tpu.pipeline_mode<synchronous>, transform_indices = @transform_0, window_bounds = array<i64: 1, 16>}, {pipeline_mode = #tpu.pipeline_mode<synchronous>, transform_indices = @transform_1, window_bounds = array<i64: 16, 1>}, {pipeline_mode = #tpu.pipeline_mode<synchronous>, transform_indices = @transform_2, window_bounds = array<i64: 3, 1>}, {transform_indices = @transform_3, window_bounds = array<i64: 16, 32>}, {transform_indices = @transform_4, window_bounds = array<i64: 1, 32>}, {transform_indices = @transform_5, window_bounds = array<i64: 1, 32>}, {transform_indices = @transform_6, window_bounds = array<i64: 1, 32>}, {transform_indices = @transform_7, window_bounds = array<i64: 16, 32>}]} {
    %c0 = arith.constant 0 : index
    %c0_0 = arith.constant 0 : index
    %0 = vector.load %arg1[%c0, %c0_0] : memref<1x16xi32, #tpu.memory_space<vmem>>, vector<1x16xi32>
    %c0_1 = arith.constant 0 : index
    %c0_2 = arith.constant 0 : index
    %1 = vector.load %arg2[%c0_1, %c0_2] : memref<16x1xi32, #tpu.memory_space<vmem>>, vector<16x1xi32>
    %c0_3 = arith.constant 0 : index
    %c0_4 = arith.constant 0 : index
    %2 = vector.load %arg4[%c0_3, %c0_4] : memref<16x32xf32, #tpu.memory_space<vmem>>, vector<16x32xf32>
    %3 = tpu.iota {dimensions = array<i32: 0>} : vector<3x16xi32>
    %4 = vector.broadcast %0 : vector<1x16xi32> to vector<3x16xi32>
    %5 = arith.cmpi eq, %3, %4 : vector<3x16xi32>
    %6 = arith.extui %5 : vector<3x16xi1> to vector<3x16xi32>
    %7 = arith.sitofp %6 : vector<3x16xi32> to vector<3x16xf32>
    %8 = tpu.iota {dimensions = array<i32: 1>} : vector<16x3xi32>
    %9 = vector.broadcast %1 : vector<16x1xi32> to vector<16x3xi32>
    %10 = arith.cmpi eq, %8, %9 : vector<16x3xi32>
    %11 = arith.extui %10 : vector<16x3xi1> to vector<16x3xi32>
    %12 = arith.sitofp %11 : vector<16x3xi32> to vector<16x3xf32>
    %c0_5 = arith.constant 0 : index
    %c0_6 = arith.constant 0 : index
    %13 = vector.load %arg3[%c0_5, %c0_6] : memref<3x1xf32, #tpu.memory_space<vmem>>, vector<3x1xf32>
    %cst = arith.constant dense<0.000000e+00> : vector<3x32xf32>
    %14 = tpu.matmul %7, %2, %cst {dimension_numbers = #tpu.dot_dimension_numbers<[1], [0], [0], [1], [0, 0, 1, 1], [], []>} : vector<3x16xf32>, vector<16x32xf32>, vector<3x32xf32> -> vector<3x32xf32>
    %15 = vector.broadcast %13 : vector<3x1xf32> to vector<3x32xf32>
    %16 = arith.mulf %14, %15 : vector<3x32xf32>
    %cst_7 = arith.constant dense<0.000000e+00> : vector<16x32xf32>
    %17 = tpu.matmul %12, %16, %cst_7 {dimension_numbers = #tpu.dot_dimension_numbers<[1], [0], [0], [1], [0, 0, 1, 1], [], []>} : vector<16x3xf32>, vector<3x32xf32>, vector<16x32xf32> -> vector<16x32xf32>
    %c0_8 = arith.constant 0 : index
    %c0_9 = arith.constant 0 : index
    %18 = vector.load %arg7[%c0_8, %c0_9] : memref<1x32xf32, #tpu.memory_space<vmem>>, vector<1x32xf32>
    %19 = vector.broadcast %18 : vector<1x32xf32> to vector<16x32xf32>
    %20 = arith.mulf %17, %19 : vector<16x32xf32>
    %21 = arith.subf %2, %20 : vector<16x32xf32>
    %22 = arith.mulf %21, %21 : vector<16x32xf32>
    %cst_10 = arith.constant dense<0.000000e+00> : vector<3x32xf32>
    %23 = tpu.matmul %7, %22, %cst_10 {dimension_numbers = #tpu.dot_dimension_numbers<[1], [0], [0], [1], [0, 0, 1, 1], [], []>} : vector<3x16xf32>, vector<16x32xf32>, vector<3x32xf32> -> vector<3x32xf32>
    %24 = vector.broadcast %13 : vector<3x1xf32> to vector<3x32xf32>
    %25 = arith.mulf %23, %24 : vector<3x32xf32>
    %cst_11 = arith.constant 9.99999997E-7 : f32
    %26 = vector.broadcast %cst_11 : f32 to vector<3x32xf32>
    %27 = arith.addf %25, %26 : vector<3x32xf32>
    %28 = math.rsqrt %27 : vector<3x32xf32>
    %cst_12 = arith.constant dense<0.000000e+00> : vector<16x32xf32>
    %29 = tpu.matmul %12, %28, %cst_12 {dimension_numbers = #tpu.dot_dimension_numbers<[1], [0], [0], [1], [0, 0, 1, 1], [], []>} : vector<16x3xf32>, vector<3x32xf32>, vector<16x32xf32> -> vector<16x32xf32>
    %c0_13 = arith.constant 0 : index
    %c0_14 = arith.constant 0 : index
    %30 = vector.load %arg5[%c0_13, %c0_14] : memref<1x32xf32, #tpu.memory_space<vmem>>, vector<1x32xf32>
    %31 = vector.broadcast %30 : vector<1x32xf32> to vector<16x32xf32>
    %32 = arith.mulf %31, %21 : vector<16x32xf32>
    %33 = arith.mulf %32, %29 : vector<16x32xf32>
    %c0_15 = arith.constant 0 : index
    %c0_16 = arith.constant 0 : index
    %34 = vector.load %arg6[%c0_15, %c0_16] : memref<1x32xf32, #tpu.memory_space<vmem>>, vector<1x32xf32>
    %35 = vector.broadcast %34 : vector<1x32xf32> to vector<16x32xf32>
    %36 = arith.addf %33, %35 : vector<16x32xf32>
    %c0_17 = arith.constant 0 : index
    %c0_18 = arith.constant 0 : index
    %37 = vector.load %arg8[%c0_17, %c0_18] : memref<16x32xf32, #tpu.memory_space<vmem>>, vector<16x32xf32>
    tpu.vector_store %arg8[%c0_17, %c0_18], %36 {strides = array<i32>} : memref<16x32xf32, #tpu.memory_space<vmem>>, vector<16x32xf32>,
    return
  }
  func.func @transform_0(%arg0: i32) -> (i32, i32) {
    %c0_i32 = arith.constant 0 : i32
    %c0_i32_0 = arith.constant 0 : i32
    %c0_i32_1 = arith.constant 0 : i32
    return %c0_i32, %c0_i32_0 : i32, i32
  }
  func.func @transform_1(%arg0: i32) -> (i32, i32) {
    %c0_i32 = arith.constant 0 : i32
    %c0_i32_0 = arith.constant 0 : i32
    %c0_i32_1 = arith.constant 0 : i32
    return %c0_i32, %c0_i32_0 : i32, i32
  }
  func.func @transform_2(%arg0: i32) -> (i32, i32) {
    %c0_i32 = arith.constant 0 : i32
    %c0_i32_0 = arith.constant 0 : i32
    %c0_i32_1 = arith.constant 0 : i32
    return %c0_i32, %c0_i32_0 : i32, i32
  }
  func.func @transform_3(%arg0: i32) -> (i32, i32) {
    %c0_i32 = arith.constant 0 : i32
    %c0_i32_0 = arith.constant 0 : i32
    return %c0_i32, %arg0 : i32, i32
  }
  func.func @transform_4(%arg0: i32) -> (i32, i32) {
    %c0_i32 = arith.constant 0 : i32
    %c0_i32_0 = arith.constant 0 : i32
    return %c0_i32, %arg0 : i32, i32
  }
  func.func @transform_5(%arg0: i32) -> (i32, i32) {
    %c0_i32 = arith.constant 0 : i32
    %c0_i32_0 = arith.constant 0 : i32
    return %c0_i32, %arg0 : i32, i32
  }
  func.func @transform_6(%arg0: i32) -> (i32, i32) {
    %c0_i32 = arith.constant 0 : i32
    %c0_i32_0 = arith.constant 0 : i32
    return %c0_i32, %arg0 : i32, i32
  }
  func.func @transform_7(%arg0: i32) -> (i32, i32) {
    %c0_i32 = arith.constant 0 : i32
    %c0_i32_0 = arith.constant 0 : i32
    return %c0_i32, %arg0 : i32, i32
  }
}

</mosaic_0001>

<llo_original>
// kernel: tpu_custom_call.1
$region0: #{tpu_custom_call.1}
  #allocation0 [shape = 'u32[]', space=smem, size = 0x4, offset = 0x4, fixed_abs, tag = 'smem constant byte address 0x4 - core index']
  #allocation1 [shape = 'u32[144,128]{1,0:T(1,128)}', space=vmem, size = 0x12000, scoped, tag = 'internal scratch']
  %s0 = inlined_call_operand.vmem [shape: s32[1,16], index: 0, kind: input, shape index: {}]
  %s1 = inlined_call_operand.vmem [shape: s32[16,1], index: 1, kind: input, shape index: {}]
  %s2 = inlined_call_operand.vmem [shape: f32[3,1], index: 2, kind: input, shape index: {}]
  %s3 = inlined_call_operand.vmem [shape: f32[16,32], index: 3, kind: input, shape index: {}]
  %s4 = inlined_call_operand.vmem [shape: f32[1,32], index: 4, kind: input, shape index: {}]
  %s5 = inlined_call_operand.vmem [shape: f32[1,32], index: 5, kind: input, shape index: {}]
  %s6 = inlined_call_operand.vmem [shape: f32[1,32], index: 6, kind: input, shape index: {}]
  %s7 = inlined_call_operand.hbm [shape: f32[16,32], index: 7, kind: output, shape index: {}]
  %s8 = sld [smem:[#allocation0]]
  $region38: #{tpu_custom_call.1} parent=0
    _
  %s10 = ssub.s32 1, %s8
  %s11 = scalar_select 0, %s10, %s8
  $region1: #{tpu_custom_call.1} parent=0
    #allocation2 [shape = 'u8[8192]{0}', space=vmem, size = 0x2000, scoped, tag = 'output window, operand 0, single buffered']
    #allocation3 [shape = 's32[1]{0}', space=sflag, size = 0x4, scoped, tag = 'scoped memory for tpu_custom_call.1']
    %12 = vsyncpa [#allocation3], 0
    // Predicated region
    $region2: #{tpu_custom_call.1} parent=1 // pred_check
      _
    $region3: #{tpu_custom_call.1} parent=1 // pred_check_branch
      %14 = sbr.rel (0) target = $region5
    $region4: #{tpu_custom_call.1} parent=1 // pred_region
      _
    $region5: #{tpu_custom_call.1} parent=1 // pred_fallthru
      _
    // Predicated region
    $region6: #{tpu_custom_call.1} parent=1 // pred_check
      _
    $region7: #{tpu_custom_call.1} parent=1 // pred_check_branch
      %16 = sbr.rel (0) target = $region9
    $region8: #{tpu_custom_call.1} parent=1 // pred_region
      _
    $region9: #{tpu_custom_call.1} parent=1 // pred_fallthru
      _
    // Predicated region
    $region10: #{tpu_custom_call.1} parent=1 // pred_check
      _
    $region11: #{tpu_custom_call.1} parent=1 // pred_check_branch
      %18 = sbr.rel (0) target = $region13
    $region12: #{tpu_custom_call.1} parent=1 // pred_region
      _
    $region13: #{tpu_custom_call.1} parent=1 // pred_fallthru
      _
    // Predicated region
    $region14: #{tpu_custom_call.1} parent=1 // pred_check
      _
    $region15: #{tpu_custom_call.1} parent=1 // pred_check_branch
      %20 = sbr.rel (0) target = $region17
    $region16: #{tpu_custom_call.1} parent=1 // pred_region
      _
    $region17: #{tpu_custom_call.1} parent=1 // pred_fallthru
      _
    // Predicated region
    $region18: #{tpu_custom_call.1} parent=1 // pred_check
      _
    $region19: #{tpu_custom_call.1} parent=1 // pred_check_branch
      %22 = sbr.rel (0) target = $region21
    $region20: #{tpu_custom_call.1} parent=1 // pred_region
      _
    $region21: #{tpu_custom_call.1} parent=1 // pred_fallthru
      _
    // Predicated region
    $region22: #{tpu_custom_call.1} parent=1 // pred_check
      _
    $region23: #{tpu_custom_call.1} parent=1 // pred_check_branch
      %24 = sbr.rel (0) target = $region25
    $region24: #{tpu_custom_call.1} parent=1 // pred_region
      _
    $region25: #{tpu_custom_call.1} parent=1 // pred_fallthru
      _
    // Predicated region
    $region26: #{tpu_custom_call.1} parent=1 // pred_check
      _
    $region27: #{tpu_custom_call.1} parent=1 // pred_check_branch
      %26 = sbr.rel (0) target = $region29
    $region28: #{tpu_custom_call.1} parent=1 // pred_region
      _
    $region29: #{tpu_custom_call.1} parent=1 // pred_fallthru
      _
    %v27 = vld [vmem:[%s0] sm:$0x1]
    %v28 = vld [vmem:[%s1] sm:$0xff]
    %v29 = vld [vmem:[%s1 + $0x8] sm:$0xff]
    %v30 = vld [vmem:[%s3] sm:$0xff]
    %v31 = vld [vmem:[%s3 + $0x8] sm:$0xff]
    %v32 = vlaneseq
    %v33 = vshrl.u32 %v32, 7
    %v34 = vlaneseq
    %v35 = vshrl.u32 %v34, 7
    %v36 = vsub.s32 0, %v35
    %v37 = vrot.slane %v27, %v36
    %vm38 = vcmp.eq.s32.totalorder %v33, %v37
    %v39 = vsel %vm38, 1, 0
    %v40 = vcvt.s32.f32 %v39
    %v41 = vlaneseq
    %v42 = vand.u32 %v41, 127
    %43 = vset.pattern.permute.xlu0 0
    %44 = vperm.xlu0 %43, %v28
    %v45 = vpop.permute.xlu0 %44
    %46 = vset.pattern.permute.xlu0 0
    %47 = vperm.xlu0 %46, %v29
    %v48 = vpop.permute.xlu0 %47
    %vm49 = vcmp.eq.s32.totalorder %v42, %v45
    %vm50 = vcmp.eq.s32.totalorder %v42, %v48
    %v51 = vsel %vm49, 1, 0
    %v52 = vsel %vm50, 1, 0
    %v53 = vcvt.s32.f32 %v51
    %v54 = vcvt.s32.f32 %v52
    %v55 = vld [vmem:[%s2] sm:$0x7]
    %vm56 = vcmask 130048
    %v58 = vsel %vm56, %v40, 0
    %60 = vmatprep.subr.mxu0 0.0
    %61 = vmatpush1.msra.mxu0 %v30
    %62 = vmatprep.subr.mxu0 0.0
    %63 = vmatpush1.msra.mxu0 %v31
    %64 = vmatprep.subr.mxu0 0.0
    %65 = vmatpush1.msra.mxu0 0.0
    %66 = vmatprep.subr.mxu0 0.0
    %67 = vmatpush1.msra.mxu0 0.0
    %68 = vmatprep.subr.mxu0 0.0
    %69 = vmatpush1.msra.mxu0 0.0
    %70 = vmatprep.subr.mxu0 0.0
    %71 = vmatpush1.msra.mxu0 0.0
    %72 = vmatprep.subr.mxu0 0.0
    %73 = vmatpush1.msra.mxu0 0.0
    %74 = vmatprep.subr.mxu0 0.0
    %75 = vmatpush1.msra.mxu0 0.0
    %76 = vmatprep.subr.mxu0 0.0
    %77 = vmatpush1.msra.mxu0 0.0
    %78 = vmatprep.subr.mxu0 0.0
    %79 = vmatpush1.msra.mxu0 0.0
    %80 = vmatprep.subr.mxu0 0.0
    %81 = vmatpush1.msra.mxu0 0.0
    %82 = vmatprep.subr.mxu0 0.0
    %83 = vmatpush1.msra.mxu0 0.0
    %84 = vmatprep.subr.mxu0 0.0
    %85 = vmatpush1.msra.mxu0 0.0
    %86 = vmatprep.subr.mxu0 0.0
    %87 = vmatpush1.msra.mxu0 0.0
    %88 = vmatprep.subr.mxu0 0.0
    %89 = vmatpush1.msra.mxu0 0.0
    %90 = vmatprep.subr.mxu0 0.0
    %91 = vmatpush1.msra.mxu0 0.0
    %92 = vmatprep.subr.mxu0 0.0
    %93 = vmatpush1.msra.mxu0 0.0
    %94 = vmatprep.subr.mxu0 0.0
    %95 = vmatpush1.msra.mxu0 0.0
    %96 = vmatprep.subr.mxu0 0.0
    %97 = vmatpush1.msra.mxu0 0.0
    %98 = vmatprep.subr.mxu0 0.0
    %99 = vmatpush1.msra.mxu0 0.0
    %100 = vmatprep.subr.mxu0 0.0
    %101 = vmatpush1.msra.mxu0 0.0
    %102 = vmatprep.subr.mxu0 0.0
    %103 = vmatpush1.msra.mxu0 0.0
    %104 = vmatprep.subr.mxu0 0.0
    %105 = vmatpush1.msra.mxu0 0.0
    %106 = vmatprep.subr.mxu0 0.0
    %107 = vmatpush1.msra.mxu0 0.0
    %108 = vmatprep.subr.mxu0 0.0
    %109 = vmatpush1.msra.mxu0 0.0
    %110 = vmatprep.subr.mxu0 0.0
    %111 = vmatpush1.msra.mxu0 0.0
    %112 = vmatprep.subr.mxu0 0.0
    %113 = vmatpush1.msra.mxu0 0.0
    %114 = vmatprep.subr.mxu0 0.0
    %115 = vmatpush1.msra.mxu0 0.0
    %116 = vmatprep.subr.mxu0 0.0
    %117 = vmatpush1.msra.mxu0 0.0
    %118 = vmatprep.subr.mxu0 0.0
    %119 = vmatpush1.msra.mxu0 0.0
    %120 = vmatprep.subr.mxu0 0.0
    %121 = vmatpush1.msra.mxu0 0.0
    %122 = vmatprep.subr.mxu0 0.0
    %123 = vmatpush1.msra.mxu0 0.0
    %124 = vmatprep.mubr.f32.mxu0 0.0
    %125 = vmatmul.mubr.f32.gmra.mrb[0].mxu0 %v58
    %v126 = vpop.f32.mrb[0].mxu0
    %v127 = vadd.f32 0.0, %v126
    %v128 = vpop.f32.mrb[0].mxu0
    %129 = vdwg.mxu0
    %131 = vset.pattern.permute.xlu0 0
    %132 = vperm.xlu0 %131, %v55
    %v133 = vpop.permute.xlu0 %132
    %v135 = vmul.f32 %v127, %v133
    %vm136 = vcmask 23552
    %v138 = vsel %vm136, %v53, 0
    %v141 = vsel %vm136, %v54, 0
    %vm143 = vcmask 1042432
    %v145 = vsel %vm143, %v135, 0
    %147 = vmatprep.subr.mxu0 0.0
    %148 = vmatpush1.msra.mxu0 %v145
    %149 = vmatprep.subr.mxu0 0.0
    %150 = vmatpush1.msra.mxu0 0.0
    %151 = vmatprep.subr.mxu0 0.0
    %152 = vmatpush1.msra.mxu0 0.0
    %153 = vmatprep.subr.mxu0 0.0
    %154 = vmatpush1.msra.mxu0 0.0
    %155 = vmatprep.subr.mxu0 0.0
    %156 = vmatpush1.msra.mxu0 0.0
    %157 = vmatprep.subr.mxu0 0.0
    %158 = vmatpush1.msra.mxu0 0.0
    %159 = vmatprep.subr.mxu0 0.0
    %160 = vmatpush1.msra.mxu0 0.0
    %161 = vmatprep.subr.mxu0 0.0
    %162 = vmatpush1.msra.mxu0 0.0
    %163 = vmatprep.subr.mxu0 0.0
    %164 = vmatpush1.msra.mxu0 0.0
    %165 = vmatprep.subr.mxu0 0.0
    %166 = vmatpush1.msra.mxu0 0.0
    %167 = vmatprep.subr.mxu0 0.0
    %168 = vmatpush1.msra.mxu0 0.0
    %169 = vmatprep.subr.mxu0 0.0
    %170 = vmatpush1.msra.mxu0 0.0
    %171 = vmatprep.subr.mxu0 0.0
    %172 = vmatpush1.msra.mxu0 0.0
    %173 = vmatprep.subr.mxu0 0.0
    %174 = vmatpush1.msra.mxu0 0.0
    %175 = vmatprep.subr.mxu0 0.0
    %176 = vmatpush1.msra.mxu0 0.0
    %177 = vmatprep.subr.mxu0 0.0
    %178 = vmatpush1.msra.mxu0 0.0
    %179 = vmatprep.subr.mxu0 0.0
    %180 = vmatpush1.msra.mxu0 0.0
    %181 = vmatprep.subr.mxu0 0.0
    %182 = vmatpush1.msra.mxu0 0.0
    %183 = vmatprep.subr.mxu0 0.0
    %184 = vmatpush1.msra.mxu0 0.0
    %185 = vmatprep.subr.mxu0 0.0
    %186 = vmatpush1.msra.mxu0 0.0
    %187 = vmatprep.subr.mxu0 0.0
    %188 = vmatpush1.msra.mxu0 0.0
    %189 = vmatprep.subr.mxu0 0.0
    %190 = vmatpush1.msra.mxu0 0.0
    %191 = vmatprep.subr.mxu0 0.0
    %192 = vmatpush1.msra.mxu0 0.0
    %193 = vmatprep.subr.mxu0 0.0
    %194 = vmatpush1.msra.mxu0 0.0
    %195 = vmatprep.subr.mxu0 0.0
    %196 = vmatpush1.msra.mxu0 0.0
    %197 = vmatprep.subr.mxu0 0.0
    %198 = vmatpush1.msra.mxu0 0.0
    %199 = vmatprep.subr.mxu0 0.0
    %200 = vmatpush1.msra.mxu0 0.0
    %201 = vmatprep.subr.mxu0 0.0
    %202 = vmatpush1.msra.mxu0 0.0
    %203 = vmatprep.subr.mxu0 0.0
    %204 = vmatpush1.msra.mxu0 0.0
    %205 = vmatprep.subr.mxu0 0.0
    %206 = vmatpush1.msra.mxu0 0.0
    %207 = vmatprep.subr.mxu0 0.0
    %208 = vmatpush1.msra.mxu0 0.0
    %209 = vmatprep.subr.mxu0 0.0
    %210 = vmatpush1.msra.mxu0 0.0
    %211 = vmatprep.mubr.f32.mxu0 0.0
    %212 = vmatmul.mubr.f32.gmra.mrb[0].mxu0 %v138
    %v213 = vpop.f32.mrb[0].mxu0
    %v214 = vadd.f32 0.0, %v213
    %v215 = vpop.f32.mrb[0].mxu0
    %216 = vmatprep.mubr.f32.mxu0 0.0
    %217 = vmatmul.mubr.f32.gmra.mrb[0].mxu0 %v141
    %v218 = vpop.f32.mrb[0].mxu0
    %v219 = vadd.f32 0.0, %v218
    %v220 = vpop.f32.mrb[0].mxu0
    %221 = vdwg.mxu0
    %v222 = vld [vmem:[%s6] sm:$0x1]
    %v224 = vlaneseq
    %v225 = vshrl.u32 %v224, 7
    %v226 = vsub.s32 0, %v225
    %v227 = vrot.slane %v222, %v226
    %v229 = vmul.f32 %v214, %v227
    %v230 = vmul.f32 %v219, %v227
    %v231 = vsub.f32 %v30, %v229
    %v232 = vsub.f32 %v31, %v230
    %v233 = vmul.f32 %v231, %v231
    %v234 = vmul.f32 %v232, %v232
    %235 = vmatprep.subr.mxu0 0.0
    %236 = vmatpush1.msra.mxu0 %v233
    %237 = vmatprep.subr.mxu0 0.0
    %238 = vmatpush1.msra.mxu0 %v234
    %239 = vmatprep.subr.mxu0 0.0
    %240 = vmatpush1.msra.mxu0 0.0
    %241 = vmatprep.subr.mxu0 0.0
    %242 = vmatpush1.msra.mxu0 0.0
    %243 = vmatprep.subr.mxu0 0.0
    %244 = vmatpush1.msra.mxu0 0.0
    %245 = vmatprep.subr.mxu0 0.0
    %246 = vmatpush1.msra.mxu0 0.0
    %247 = vmatprep.subr.mxu0 0.0
    %248 = vmatpush1.msra.mxu0 0.0
    %249 = vmatprep.subr.mxu0 0.0
    %250 = vmatpush1.msra.mxu0 0.0
    %251 = vmatprep.subr.mxu0 0.0
    %252 = vmatpush1.msra.mxu0 0.0
    %253 = vmatprep.subr.mxu0 0.0
    %254 = vmatpush1.msra.mxu0 0.0
    %255 = vmatprep.subr.mxu0 0.0
    %256 = vmatpush1.msra.mxu0 0.0
    %257 = vmatprep.subr.mxu0 0.0
    %258 = vmatpush1.msra.mxu0 0.0
    %259 = vmatprep.subr.mxu0 0.0
    %260 = vmatpush1.msra.mxu0 0.0
    %261 = vmatprep.subr.mxu0 0.0
    %262 = vmatpush1.msra.mxu0 0.0
    %263 = vmatprep.subr.mxu0 0.0
    %264 = vmatpush1.msra.mxu0 0.0
    %265 = vmatprep.subr.mxu0 0.0
    %266 = vmatpush1.msra.mxu0 0.0
    %267 = vmatprep.subr.mxu0 0.0
    %268 = vmatpush1.msra.mxu0 0.0
    %269 = vmatprep.subr.mxu0 0.0
    %270 = vmatpush1.msra.mxu0 0.0
    %271 = vmatprep.subr.mxu0 0.0
    %272 = vmatpush1.msra.mxu0 0.0
    %273 = vmatprep.subr.mxu0 0.0
    %274 = vmatpush1.msra.mxu0 0.0
    %275 = vmatprep.subr.mxu0 0.0
    %276 = vmatpush1.msra.mxu0 0.0
    %277 = vmatprep.subr.mxu0 0.0
    %278 = vmatpush1.msra.mxu0 0.0
    %279 = vmatprep.subr.mxu0 0.0
    %280 = vmatpush1.msra.mxu0 0.0
    %281 = vmatprep.subr.mxu0 0.0
    %282 = vmatpush1.msra.mxu0 0.0
    %283 = vmatprep.subr.mxu0 0.0
    %284 = vmatpush1.msra.mxu0 0.0
    %285 = vmatprep.subr.mxu0 0.0
    %286 = vmatpush1.msra.mxu0 0.0
    %287 = vmatprep.subr.mxu0 0.0
    %288 = vmatpush1.msra.mxu0 0.0
    %289 = vmatprep.subr.mxu0 0.0
    %290 = vmatpush1.msra.mxu0 0.0
    %291 = vmatprep.subr.mxu0 0.0
    %292 = vmatpush1.msra.mxu0 0.0
    %293 = vmatprep.subr.mxu0 0.0
    %294 = vmatpush1.msra.mxu0 0.0
    %295 = vmatprep.subr.mxu0 0.0
    %296 = vmatpush1.msra.mxu0 0.0
    %297 = vmatprep.subr.mxu0 0.0
    %298 = vmatpush1.msra.mxu0 0.0
    %299 = vmatprep.mubr.f32.mxu0 0.0
    %300 = vmatmul.mubr.f32.gmra.mrb[0].mxu0 %v58
    %v301 = vpop.f32.mrb[0].mxu0
    %v302 = vadd.f32 0.0, %v301
    %v303 = vpop.f32.mrb[0].mxu0
    %304 = vdwg.mxu0
    %v305 = vmul.f32 %v302, %v133
    %v306 = vadd.f32 %v305, 1e-06
    %v307 = vrsqrt.pop %v306
    %v309 = vsel %vm143, %v307, 0
    %311 = vmatprep.subr.mxu0 0.0
    %312 = vmatpush1.msra.mxu0 %v309
    %313 = vmatprep.subr.mxu0 0.0
    %314 = vmatpush1.msra.mxu0 0.0
    %315 = vmatprep.subr.mxu0 0.0
    %316 = vmatpush1.msra.mxu0 0.0
    %317 = vmatprep.subr.mxu0 0.0
    %318 = vmatpush1.msra.mxu0 0.0
    %319 = vmatprep.subr.mxu0 0.0
    %320 = vmatpush1.msra.mxu0 0.0
    %321 = vmatprep.subr.mxu0 0.0
    %322 = vmatpush1.msra.mxu0 0.0
    %323 = vmatprep.subr.mxu0 0.0
    %324 = vmatpush1.msra.mxu0 0.0
    %325 = vmatprep.subr.mxu0 0.0
    %326 = vmatpush1.msra.mxu0 0.0
    %327 = vmatprep.subr.mxu0 0.0
    %328 = vmatpush1.msra.mxu0 0.0
    %329 = vmatprep.subr.mxu0 0.0
    %330 = vmatpush1.msra.mxu0 0.0
    %331 = vmatprep.subr.mxu0 0.0
    %332 = vmatpush1.msra.mxu0 0.0
    %333 = vmatprep.subr.mxu0 0.0
    %334 = vmatpush1.msra.mxu0 0.0
    %335 = vmatprep.subr.mxu0 0.0
    %336 = vmatpush1.msra.mxu0 0.0
    %337 = vmatprep.subr.mxu0 0.0
    %338 = vmatpush1.msra.mxu0 0.0
    %339 = vmatprep.subr.mxu0 0.0
    %340 = vmatpush1.msra.mxu0 0.0
    %341 = vmatprep.subr.mxu0 0.0
    %342 = vmatpush1.msra.mxu0 0.0
    %343 = vmatprep.subr.mxu0 0.0
    %344 = vmatpush1.msra.mxu0 0.0
    %345 = vmatprep.subr.mxu0 0.0
    %346 = vmatpush1.msra.mxu0 0.0
    %347 = vmatprep.subr.mxu0 0.0
    %348 = vmatpush1.msra.mxu0 0.0
    %349 = vmatprep.subr.mxu0 0.0
    %350 = vmatpush1.msra.mxu0 0.0
    %351 = vmatprep.subr.mxu0 0.0
    %352 = vmatpush1.msra.mxu0 0.0
    %353 = vmatprep.subr.mxu0 0.0
    %354 = vmatpush1.msra.mxu0 0.0
    %355 = vmatprep.subr.mxu0 0.0
    %356 = vmatpush1.msra.mxu0 0.0
    %357 = vmatprep.subr.mxu0 0.0
    %358 = vmatpush1.msra.mxu0 0.0
    %359 = vmatprep.subr.mxu0 0.0
    %360 = vmatpush1.msra.mxu0 0.0
    %361 = vmatprep.subr.mxu0 0.0
    %362 = vmatpush1.msra.mxu0 0.0
    %363 = vmatprep.subr.mxu0 0.0
    %364 = vmatpush1.msra.mxu0 0.0
    %365 = vmatprep.subr.mxu0 0.0
    %366 = vmatpush1.msra.mxu0 0.0
    %367 = vmatprep.subr.mxu0 0.0
    %368 = vmatpush1.msra.mxu0 0.0
    %369 = vmatprep.subr.mxu0 0.0
    %370 = vmatpush1.msra.mxu0 0.0
    %371 = vmatprep.subr.mxu0 0.0
    %372 = vmatpush1.msra.mxu0 0.0
    %373 = vmatprep.subr.mxu0 0.0
    %374 = vmatpush1.msra.mxu0 0.0
    %375 = vmatprep.mubr.f32.mxu0 0.0
    %376 = vmatmul.mubr.f32.gmra.mrb[0].mxu0 %v138
    %v377 = vpop.f32.mrb[0].mxu0
    %v378 = vadd.f32 0.0, %v377
    %v379 = vpop.f32.mrb[0].mxu0
    %380 = vmatprep.mubr.f32.mxu0 0.0
    %381 = vmatmul.mubr.f32.gmra.mrb[0].mxu0 %v141
    %v382 = vpop.f32.mrb[0].mxu0
    %v383 = vadd.f32 0.0, %v382
    %v384 = vpop.f32.mrb[0].mxu0
    %385 = vdwg.mxu0
    %v386 = vld [vmem:[%s4] sm:$0x1]
    %v388 = vlaneseq
    %v389 = vshrl.u32 %v388, 7
    %v390 = vsub.s32 0, %v389
    %v391 = vrot.slane %v386, %v390
    %v393 = vmul.f32 %v391, %v231
    %v394 = vmul.f32 %v391, %v232
    %v395 = vmul.f32 %v393, %v378
    %v396 = vmul.f32 %v394, %v383
    %v397 = vld [vmem:[%s5] sm:$0x1]
    %v399 = vlaneseq
    %v400 = vshrl.u32 %v399, 7
    %v401 = vsub.s32 0, %v400
    %v402 = vrot.slane %v397, %v401
    %v404 = vadd.f32 %v395, %v402
    %v405 = vadd.f32 %v396, %v402
    %vm406 = vcmask 261120
    %407 = vst.msk [vmem:[#allocation2] sm:$0xff] %vm406, %v404
    %408 = vst.msk [vmem:[#allocation2 + $0x8] sm:$0xff] %vm406, %v405
    // Predicated region
    $region30: #{tpu_custom_call.1} parent=1 // pred_check
      _
    $region31: #{tpu_custom_call.1} parent=1 // pred_check_branch
      %410 = sbr.rel (0) target = $region33
    $region32: #{tpu_custom_call.1} parent=1 // pred_region
      %s412 = ssub.s32 256, 256
      %413 = vsyncadd [#allocation3], %s412
      %s414 = sshll.u32 [#allocation2], 4
      %s415 = int_to_ptr.vmem [resolvable:$true] %s414
      %420 = dma.vmem_to_hbm [thread:$0]  %s415, 256, %s7, [#allocation3], 128, 128, 8
    $region33: #{tpu_custom_call.1} parent=1 // pred_fallthru
      _
    // Predicated region
    $region34: #{tpu_custom_call.1} parent=1 // pred_check
      _
    $region35: #{tpu_custom_call.1} parent=1 // pred_check_branch
      %422 = sbr.rel (0) target = $region37
    $region36: #{tpu_custom_call.1} parent=1 // pred_region
      %423 = dma.done [#allocation3], 256
    $region37: #{tpu_custom_call.1} parent=1 // pred_fallthru
      _
    %424 = vsyncpa [#allocation3], 1

</llo_original>
